<compile_context>
chip_gen: v7x
topology: tpu7x:2x2x1
jax: 0.10.0
libtpu: 0.0.40
codegen_flags: <defaults>
</compile_context>

<pallas_src>
import math
from functools import partial

import jax
import jax.numpy as jnp
from jax.experimental import pallas as pl
from jax.experimental.pallas import tpu as pltpu

EPS = 1e-6


def _vmem_capacity_bytes():
    try:
        return int(pltpu.get_tpu_info().vmem_capacity_bytes)
    except Exception:
        return 64 * 1024 * 1024  # conservative fallback (v7x per-TC VMEM)


def gem_kernel(p_ref, x_ref, o_ref, acc_ref, *, n_total, tn, ragged_n):
    # p_ref:   SMEM (1,) f32 scalar-prefetch -- the learnable GeM exponent p
    # x_ref:   VMEM (tb, tn, d_blk) input tile
    # o_ref:   VMEM (tb, d_blk) output block (resident across the reduction axis)
    # acc_ref: VMEM (tb, d_blk) f32 running sum of clamp(x, eps)**p over the N axis
    k = pl.program_id(2)
    nk = pl.num_programs(2)
    p = p_ref[0]

    @pl.when(k == 0)
    def _():
        acc_ref[...] = jnp.zeros_like(acc_ref)

    def accumulate(mask_tail):
        x = jnp.maximum(x_ref[...].astype(jnp.float32), EPS)   # clamp(min=eps) > 0
        xp = jnp.exp(p * jnp.log(x))                            # x**p for positive x (EUP)
        if mask_tail:
            # Only the last N tile can contain invalid rows; zero them after the pow.
            rem = n_total - k * tn                              # valid rows in this tile
            row = jax.lax.broadcasted_iota(jnp.int32, (1, tn, 1), 1)
            xp = jnp.where(row < rem, xp, 0.0)
        acc_ref[...] += jnp.sum(xp, axis=1)                     # (tb, d_blk)

    if ragged_n:
        @pl.when(k < nk - 1)
        def _():
            accumulate(False)

        @pl.when(k == nk - 1)
        def _():
            accumulate(True)
    else:
        accumulate(False)

    @pl.when(k == nk - 1)
    def _():
        # mean**(1/p) = exp((log(sum) - log(N)) / p); sum >= N*eps^p > 0 so log is safe.
        log_n = jnp.float32(math.log(n_total))
        o_ref[...] = jnp.exp((jnp.log(acc_ref[...]) - log_n) / p).astype(o_ref.dtype)


def gem_forward(x, p, *, tn_cap=512, d_cap=512):
    """GeM pooling: mean(clamp(x, eps)**p, axis=1)**(1/p).  x: (B, N, D) -> (B, D)."""
    B, N, D = x.shape
    out_dtype = x.dtype
    x_itemsize = jnp.dtype(x.dtype).itemsize
    out_itemsize = jnp.dtype(out_dtype).itemsize

    # Batch tile: (16,128)-dense output tile for bf16, (8,128) otherwise.
    tb = 16 if jnp.dtype(out_dtype) == jnp.dtype(jnp.bfloat16) else 8

    # Feature blocking: only when D is 128-aligned; otherwise the full D extent is the
    # block (allowed when the block dim equals the array dim). No wrapper-side padding.
    if D % 128 == 0:
        d_blk = min(D, max(128, (int(d_cap) // 128) * 128))
    else:
        d_blk = D

    # VMEM-aware N tile: cap the input double-buffer at ~half of the per-TC VMEM
    # (<=64 MiB), so v7x (64 MiB VMEM) still compiles and v5e/v6e keep big tiles.
    cap = _vmem_capacity_bytes()
    budget = min(cap // 2, 64 * 1024 * 1024)
    tn_max = max(8, budget // (2 * tb * d_blk * x_itemsize))
    tn = int(min(N, tn_cap, tn_max))
    if tn < N:
        tn = max(8, (tn // 8) * 8)          # sublane-aligned when not the full extent
    ragged_n = (N % tn) != 0

    grid = (pl.cdiv(B, tb), pl.cdiv(D, d_blk), pl.cdiv(N, tn))

    vmem_need = (2 * tb * tn * d_blk * x_itemsize    # input double buffer
                 + tb * d_blk * 4                    # f32 accumulator
                 + 2 * tb * d_blk * out_itemsize)    # output double buffer
    vmem_limit = int(min(cap, max(vmem_need + (4 << 20), 16 << 20)))

    p_arr = jnp.asarray(p, jnp.float32).reshape(1)
    kernel = partial(gem_kernel, n_total=N, tn=tn, ragged_n=ragged_n)

    return pl.pallas_call(
        kernel,
        out_shape=jax.ShapeDtypeStruct((B, D), out_dtype),
        grid_spec=pltpu.PrefetchScalarGridSpec(
            num_scalar_prefetch=1,                                  # p -> SMEM once
            grid=grid,
            in_specs=[
                pl.BlockSpec((tb, tn, d_blk), lambda b, d, k, p_sm: (b, k, d)),
            ],
            out_specs=pl.BlockSpec((tb, d_blk), lambda b, d, k, p_sm: (b, d)),
            scratch_shapes=[pltpu.VMEM((tb, d_blk), jnp.float32)],  # running sum
        ),
        compiler_params=pltpu.CompilerParams(
            dimension_semantics=("parallel", "parallel", "arbitrary"),
            vmem_limit_bytes=vmem_limit,
        ),
    )(p_arr, x)


def gem_reference(x, p):
    xf = jnp.maximum(x.astype(jnp.float32), EPS)
    return (jnp.mean(xf ** p, axis=1) ** (1.0 / p)).astype(x.dtype)


if __name__ == "__main__":
    key = jax.random.PRNGKey(0)
    k1, k2, k3 = jax.random.split(key, 3)

    # Deterministic parameter init, matching nn.Parameter(torch.ones(1) * 3)
    p = jnp.float32(3.0)

    # Primary case: small MIL bag (batch=2, instances=8, features=32), f32.
    x1 = jax.random.normal(k1, (2, 8, 32), dtype=jnp.float32)
    out1 = jax.block_until_ready(gem_forward(x1, p))
    ref1 = gem_reference(x1, p)
    assert out1.shape == (2, 32), out1.shape
    err1 = float(jnp.max(jnp.abs(out1 - ref1)))
    assert jnp.allclose(out1, ref1, atol=1e-4, rtol=1e-4), err1

    # Ragged N tail + ragged B block + non-128-aligned D (multi-step reduction, tail mask).
    x2 = jax.random.normal(k2, (3, 37, 160), dtype=jnp.float32)
    out2 = jax.block_until_ready(gem_forward(x2, p, tn_cap=16))
    ref2 = gem_reference(x2, p)
    err2 = float(jnp.max(jnp.abs(out2 - ref2)))
    assert jnp.allclose(out2, ref2, atol=1e-4, rtol=1e-4), err2

    # bf16 input/output, D-blocked parallel grid axis, tb=16 output tile.
    x3 = jax.random.normal(k3, (2, 20, 256), dtype=jnp.bfloat16)
    out3 = jax.block_until_ready(gem_forward(x3, p, tn_cap=8, d_cap=128))
    ref3 = gem_reference(x3, p)
    a3 = out3.astype(jnp.float32)
    r3 = ref3.astype(jnp.float32)
    err3 = float(jnp.max(jnp.abs(a3 - r3)))
    assert jnp.allclose(a3, r3, atol=2e-2, rtol=2e-2), err3

    print("KERNEL_OK")
</pallas_src>

<mosaic_0001>
module attributes {stable_mosaic.version = 11 : i64} {
  func.func @gem_kernel(%arg0: i32, %arg1: i32, %arg2: i32, %arg3: memref<1xf32, #tpu.memory_space<smem>>, %arg4: memref<8x8x32xf32, #tpu.memory_space<vmem>>, %arg5: memref<8x32xf32, #tpu.memory_space<vmem>>, %arg6: memref<8x32xf32, #tpu.memory_space<vmem>>) attributes {dimension_semantics = [#tpu.dimension_semantics<parallel>, #tpu.dimension_semantics<parallel>, #tpu.dimension_semantics<arbitrary>], iteration_bounds = array<i64: 1, 1, 1>, scalar_prefetch = 1 : i64, scratch_operands = 1 : i64, tpu.core_type = #tpu.core_type<tc>, window_params = [{transform_indices = @transform_0, window_bounds = array<i64: 8, 8, 32>}, {transform_indices = @transform_1, window_bounds = array<i64: 8, 32>}]} {
    %c0 = arith.constant 0 : index
    %0 = memref.load %arg3[%c0] : memref<1xf32, #tpu.memory_space<smem>>
    %c0_i32 = arith.constant 0 : i32
    %1 = arith.cmpi eq, %arg2, %c0_i32 : i32
    %2 = arith.extui %1 : i1 to i32
    %c0_i32_0 = arith.constant 0 : i32
    %3 = arith.cmpi ne, %2, %c0_i32_0 : i32
    scf.if %3 {
      %cst_11 = arith.constant 0.000000e+00 : f32
      %18 = vector.broadcast %cst_11 : f32 to vector<8x32xf32>
      %c0_12 = arith.constant 0 : index
      %c0_13 = arith.constant 0 : index
      %19 = vector.load %arg6[%c0_12, %c0_13] : memref<8x32xf32, #tpu.memory_space<vmem>>, vector<8x32xf32>
      tpu.vector_store %arg6[%c0_12, %c0_13], %18 {strides = array<i32>} : memref<8x32xf32, #tpu.memory_space<vmem>>, vector<8x32xf32>,
    } else {
    }
    %c0_1 = arith.constant 0 : index
    %c0_2 = arith.constant 0 : index
    %c0_3 = arith.constant 0 : index
    %4 = vector.load %arg4[%c0_1, %c0_2, %c0_3] : memref<8x8x32xf32, #tpu.memory_space<vmem>>, vector<8x8x32xf32>
    %cst = arith.constant 9.99999997E-7 : f32
    %5 = vector.broadcast %cst : f32 to vector<8x8x32xf32>
    %6 = arith.maximumf %4, %5 : vector<8x8x32xf32>
    %7 = math.log %6 : vector<8x8x32xf32>
    %8 = vector.broadcast %0 : f32 to vector<8x8x32xf32>
    %9 = arith.mulf %8, %7 : vector<8x8x32xf32>
    %10 = math.exp %9 : vector<8x8x32xf32>
    %c0_4 = arith.constant 0 : index
    %c0_5 = arith.constant 0 : index
    %11 = vector.load %arg6[%c0_4, %c0_5] : memref<8x32xf32, #tpu.memory_space<vmem>>, vector<8x32xf32>
    %cst_6 = arith.constant dense<0.000000e+00> : vector<8x32xf32>
    %12 = vector.multi_reduction <add>, %10, %cst_6 [1] : vector<8x8x32xf32> to vector<8x32xf32>
    %13 = arith.addf %11, %12 : vector<8x32xf32>
    %c0_7 = arith.constant 0 : index
    %c0_8 = arith.constant 0 : index
    %14 = vector.load %arg6[%c0_7, %c0_8] : memref<8x32xf32, #tpu.memory_space<vmem>>, vector<8x32xf32>
    tpu.vector_store %arg6[%c0_7, %c0_8], %13 {strides = array<i32>} : memref<8x32xf32, #tpu.memory_space<vmem>>, vector<8x32xf32>,
    %c0_i32_9 = arith.constant 0 : i32
    %15 = arith.cmpi eq, %arg2, %c0_i32_9 : i32
    %16 = arith.extui %15 : i1 to i32
    %c0_i32_10 = arith.constant 0 : i32
    %17 = arith.cmpi ne, %16, %c0_i32_10 : i32
    scf.if %17 {
      %c0_11 = arith.constant 0 : index
      %c0_12 = arith.constant 0 : index
      %18 = vector.load %arg6[%c0_11, %c0_12] : memref<8x32xf32, #tpu.memory_space<vmem>>, vector<8x32xf32>
      %19 = math.log %18 : vector<8x32xf32>
      %cst_13 = arith.constant 2.07944155 : f32
      %20 = vector.broadcast %cst_13 : f32 to vector<8x32xf32>
      %21 = arith.subf %19, %20 : vector<8x32xf32>
      %22 = vector.broadcast %0 : f32 to vector<8x32xf32>
      %23 = arith.divf %21, %22 : vector<8x32xf32>
      %24 = math.exp %23 : vector<8x32xf32>
      %c0_14 = arith.constant 0 : index
      %c0_15 = arith.constant 0 : index
      %25 = vector.load %arg5[%c0_14, %c0_15] : memref<8x32xf32, #tpu.memory_space<vmem>>, vector<8x32xf32>
      tpu.vector_store %arg5[%c0_14, %c0_15], %24 {strides = array<i32>} : memref<8x32xf32, #tpu.memory_space<vmem>>, vector<8x32xf32>,
    } else {
    }
    return
  }
  func.func @transform_0(%arg0: i32, %arg1: i32, %arg2: i32, %arg3: memref<1xf32, #tpu.memory_space<smem>>) -> (i32, i32, i32) {
    %c0_i32 = arith.constant 0 : i32
    return %arg0, %arg2, %arg1 : i32, i32, i32
  }
  func.func @transform_1(%arg0: i32, %arg1: i32, %arg2: i32, %arg3: memref<1xf32, #tpu.memory_space<smem>>) -> (i32, i32) {
    %c0_i32 = arith.constant 0 : i32
    return %arg0, %arg1 : i32, i32
  }
}

</mosaic_0001>

<llo_original>
// kernel: tpu_custom_call.1
$region0: #{tpu_custom_call.1}
  #allocation0 [shape = 'u32[]', space=smem, size = 0x4, offset = 0x4, fixed_abs, tag = 'smem constant byte address 0x4 - core index']
  #allocation1 [shape = 'u32[144,128]{1,0:T(1,128)}', space=vmem, size = 0x12000, scoped, tag = 'internal scratch']
  #allocation2 [shape = 'f32[8,32]{1,0:T(8,128)}', space=vmem, size = 0x1000, scoped, tag = 'scratch operand']
  #allocation3 [shape = 's32[1]{0}', space=sflag, size = 0x4, scoped, tag = 'scoped memory for tpu_custom_call.1']
  #allocation4 [shape = 'f32[1]{0:T(128)S(6)}', space=smem, size = 0x200, scoped, tag = 'prefetched SMEM operand 0']
  %s0 = inlined_call_operand.<no memory space> [shape: f32[1], index: 0, kind: input, shape index: {}]
  %s1 = inlined_call_operand.hbm [shape: f32[2,8,32], index: 1, kind: input, shape index: {}]
  %s2 = inlined_call_operand.hbm [shape: f32[2,32], index: 2, kind: output, shape index: {}]
  %s3 = sld [smem:[#allocation0]]
  $region26: #{tpu_custom_call.1} parent=0
    _
  %s5 = ssub.s32 1, %s3
  %s6 = scalar_select 0, %s5, %s3
  %7 = sst [smem:[#allocation4]] %s0
  $region1: #{tpu_custom_call.1} parent=0
    #allocation5 [shape = 'u8[32768]{0}', space=vmem, size = 0x8000, scoped, tag = 'input window, operand 1, single buffered']
    #allocation6 [shape = 's32[1]{0}', space=sflag, size = 0x4, scoped, tag = 'scoped memory for tpu_custom_call.1']
    #allocation7 [shape = 's32[1]{0}', space=sflag, size = 0x4, scoped, tag = 'scoped memory for tpu_custom_call.1']
    #allocation8 [shape = 'u8[4096]{0}', space=vmem, size = 0x1000, scoped, tag = 'output window, operand 0, single buffered']
    %8 = vsyncpa [#allocation6], 0
    %9 = vsyncpa [#allocation7], 0
    // Predicated region
    $region2: #{tpu_custom_call.1} parent=1 // pred_check
      _
    $region3: #{tpu_custom_call.1} parent=1 // pred_check_branch
      %11 = sbr.rel (0) target = $region5
    $region4: #{tpu_custom_call.1} parent=1 // pred_region
      %s13 = ssub.s32 1024, 256
      %14 = vsyncadd [#allocation6], %s13
      %s15 = sshll.u32 [#allocation5], 4
      %s16 = int_to_ptr.vmem [resolvable:$true] %s15
      %21 = dma.hbm_to_vmem [thread:$0]  %s1, 256, %s16, [#allocation6], 128, 128, 8
    $region5: #{tpu_custom_call.1} parent=1 // pred_fallthru
      _
    // Predicated region
    $region6: #{tpu_custom_call.1} parent=1 // pred_check
      _
    $region7: #{tpu_custom_call.1} parent=1 // pred_check_branch
      %23 = sbr.rel (0) target = $region9
    $region8: #{tpu_custom_call.1} parent=1 // pred_region
      %24 = dma.done [#allocation6], 1024
    $region9: #{tpu_custom_call.1} parent=1 // pred_fallthru
      _
    %s25 = sld [smem:[#allocation4]]
    %p26 = scmp.eq.s32.totalorder 0, 0
    // Predicated region
    $region10: #{tpu_custom_call.1} parent=1 // pred_check
      %p27 = pneg %p26
    $region11: #{tpu_custom_call.1} parent=1 // pred_check_branch
      %29 = sbr.rel (%p27) target = $region13
    $region12: #{tpu_custom_call.1} parent=1 // pred_region
      %vm30 = vcmask 261120
      %31 = vst.msk [vmem:[#allocation2] sm:$0xff] %vm30, 0.0
    $region13: #{tpu_custom_call.1} parent=1 // pred_fallthru
      _
    %v32 = vld [vmem:[#allocation5] sm:$0xff]
    %v33 = vld [vmem:[#allocation5 + $0x8] sm:$0xff]
    %v34 = vld [vmem:[#allocation5 + $0x10] sm:$0xff]
    %v35 = vld [vmem:[#allocation5 + $0x18] sm:$0xff]
    %v36 = vld [vmem:[#allocation5 + $0x20] sm:$0xff]
    %v37 = vld [vmem:[#allocation5 + $0x28] sm:$0xff]
    %v38 = vld [vmem:[#allocation5 + $0x30] sm:$0xff]
    %v39 = vld [vmem:[#allocation5 + $0x38] sm:$0xff]
    %v40 = vmax.f32 %v32, 1e-06
    %v41 = vmax.f32 %v33, 1e-06
    %v42 = vmax.f32 %v34, 1e-06
    %v43 = vmax.f32 %v35, 1e-06
    %v44 = vmax.f32 %v36, 1e-06
    %v45 = vmax.f32 %v37, 1e-06
    %v46 = vmax.f32 %v38, 1e-06
    %v47 = vmax.f32 %v39, 1e-06
    %v48 = vlog2.pop %v40
    %v49 = vmul.f32 %v48, 0.6931472
    %v50 = vlog2.pop %v41
    %v51 = vmul.f32 %v50, 0.6931472
    %v52 = vlog2.pop %v42
    %v53 = vmul.f32 %v52, 0.6931472
    %v54 = vlog2.pop %v43
    %v55 = vmul.f32 %v54, 0.6931472
    %v56 = vlog2.pop %v44
    %v57 = vmul.f32 %v56, 0.6931472
    %v58 = vlog2.pop %v45
    %v59 = vmul.f32 %v58, 0.6931472
    %v60 = vlog2.pop %v46
    %v61 = vmul.f32 %v60, 0.6931472
    %v62 = vlog2.pop %v47
    %v63 = vmul.f32 %v62, 0.6931472
    %v64 = vstv %s25
    %v65 = vmul.f32 %v64, %v49
    %v66 = vmul.f32 %v64, %v51
    %v67 = vmul.f32 %v64, %v53
    %v68 = vmul.f32 %v64, %v55
    %v69 = vmul.f32 %v64, %v57
    %v70 = vmul.f32 %v64, %v59
    %v71 = vmul.f32 %v64, %v61
    %v72 = vmul.f32 %v64, %v63
    %v73 = vmul.f32 %v65, 1.442695
    %v74 = vpow.pop %v73
    %v75 = vmul.f32 %v66, 1.442695
    %v76 = vpow.pop %v75
    %v77 = vmul.f32 %v67, 1.442695
    %v78 = vpow.pop %v77
    %v79 = vmul.f32 %v68, 1.442695
    %v80 = vpow.pop %v79
    %v81 = vmul.f32 %v69, 1.442695
    %v82 = vpow.pop %v81
    %v83 = vmul.f32 %v70, 1.442695
    %v84 = vpow.pop %v83
    %v85 = vmul.f32 %v71, 1.442695
    %v86 = vpow.pop %v85
    %v87 = vmul.f32 %v72, 1.442695
    %v88 = vpow.pop %v87
    %v89 = vld [vmem:[#allocation2] sm:$0xff]
    %vm90 = vcmask 261120
    %v91 = vsel %vm90, %v74, 0.0
    %v92 = vrot.slane %v91, 4
    %v93 = vadd.f32 %v91, %v92
    %v94 = vrot.slane %v93, 2
    %v95 = vadd.f32 %v93, %v94
    %v96 = vrot.slane %v95, 1
    %v97 = vadd.f32 %v95, %v96
    %v98 = vsel %vm90, %v76, 0.0
    %v99 = vrot.slane %v98, 4
    %v100 = vadd.f32 %v98, %v99
    %v101 = vrot.slane %v100, 2
    %v102 = vadd.f32 %v100, %v101
    %v103 = vrot.slane %v102, 1
    %v104 = vadd.f32 %v102, %v103
    %v105 = vsel %vm90, %v78, 0.0
    %v106 = vrot.slane %v105, 4
    %v107 = vadd.f32 %v105, %v106
    %v108 = vrot.slane %v107, 2
    %v109 = vadd.f32 %v107, %v108
    %v110 = vrot.slane %v109, 1
    %v111 = vadd.f32 %v109, %v110
    %v112 = vsel %vm90, %v80, 0.0
    %v113 = vrot.slane %v112, 4
    %v114 = vadd.f32 %v112, %v113
    %v115 = vrot.slane %v114, 2
    %v116 = vadd.f32 %v114, %v115
    %v117 = vrot.slane %v116, 1
    %v118 = vadd.f32 %v116, %v117
    %v119 = vsel %vm90, %v82, 0.0
    %v120 = vrot.slane %v119, 4
    %v121 = vadd.f32 %v119, %v120
    %v122 = vrot.slane %v121, 2
    %v123 = vadd.f32 %v121, %v122
    %v124 = vrot.slane %v123, 1
    %v125 = vadd.f32 %v123, %v124
    %v126 = vsel %vm90, %v84, 0.0
    %v127 = vrot.slane %v126, 4
    %v128 = vadd.f32 %v126, %v127
    %v129 = vrot.slane %v128, 2
    %v130 = vadd.f32 %v128, %v129
    %v131 = vrot.slane %v130, 1
    %v132 = vadd.f32 %v130, %v131
    %v133 = vsel %vm90, %v86, 0.0
    %v134 = vrot.slane %v133, 4
    %v135 = vadd.f32 %v133, %v134
    %v136 = vrot.slane %v135, 2
    %v137 = vadd.f32 %v135, %v136
    %v138 = vrot.slane %v137, 1
    %v139 = vadd.f32 %v137, %v138
    %v140 = vsel %vm90, %v88, 0.0
    %v141 = vrot.slane %v140, 4
    %v142 = vadd.f32 %v140, %v141
    %v143 = vrot.slane %v142, 2
    %v144 = vadd.f32 %v142, %v143
    %v145 = vrot.slane %v144, 1
    %v146 = vadd.f32 %v144, %v145
    %vm155 = vcmask 1041409
    %v156 = vsel %vm155, %v104, %v97
    %vm157 = vcmask 1042434
    %v158 = vsel %vm157, %v111, %v156
    %vm159 = vcmask 1043459
    %v160 = vsel %vm159, %v118, %v158
    %vm161 = vcmask 1044484
    %v162 = vsel %vm161, %v125, %v160
    %vm163 = vcmask 1045509
    %v164 = vsel %vm163, %v132, %v162
    %vm165 = vcmask 1046534
    %v166 = vsel %vm165, %v139, %v164
    %vm167 = vcmask 1047559
    %v168 = vsel %vm167, %v146, %v166
    %v170 = vadd.f32 %v89, %v168
    %171 = vst.msk [vmem:[#allocation2] sm:$0xff] %vm90, %v170
    // Predicated region
    $region14: #{tpu_custom_call.1} parent=1 // pred_check
      %p172 = pneg %p26
    $region15: #{tpu_custom_call.1} parent=1 // pred_check_branch
      %174 = sbr.rel (%p172) target = $region17
    $region16: #{tpu_custom_call.1} parent=1 // pred_region
      %v175 = vld [vmem:[#allocation2] sm:$0xff]
      %v176 = vlog2.pop %v175
      %v177 = vmul.f32 %v176, 0.6931472
      %v178 = vsub.f32 %v177, 2.0794415
      %v179 = vrcp.pop %v64
      %v180 = vmul.f32 %v178, %v179
      %v181 = vmul.f32 %v180, 1.442695
      %v182 = vpow.pop %v181
      %183 = vst.msk [vmem:[#allocation8] sm:$0xff] %vm90, %v182
    $region17: #{tpu_custom_call.1} parent=1 // pred_fallthru
      _
    // Predicated region
    $region18: #{tpu_custom_call.1} parent=1 // pred_check
      _
    $region19: #{tpu_custom_call.1} parent=1 // pred_check_branch
      %185 = sbr.rel (0) target = $region21
    $region20: #{tpu_custom_call.1} parent=1 // pred_region
      %s187 = ssub.s32 128, 32
      %188 = vsyncadd [#allocation7], %s187
      %s189 = sshll.u32 [#allocation8], 4
      %s190 = int_to_ptr.vmem [resolvable:$true] %s189
      %195 = dma.vmem_to_hbm [thread:$0]  %s190, 32, %s2, [#allocation7], 32, 32, 2
    $region21: #{tpu_custom_call.1} parent=1 // pred_fallthru
      _
    // Predicated region
    $region22: #{tpu_custom_call.1} parent=1 // pred_check
      _
    $region23: #{tpu_custom_call.1} parent=1 // pred_check_branch
      %197 = sbr.rel (0) target = $region25
    $region24: #{tpu_custom_call.1} parent=1 // pred_region
      %198 = dma.done [#allocation7], 128
    $region25: #{tpu_custom_call.1} parent=1 // pred_fallthru
      _
    %199 = vsyncpa [#allocation6], 1
    %200 = vsyncpa [#allocation7], 1

</llo_original>
